<compile_context>
chip_gen: v7x
topology: tpu7x:2x2x1
jax: 0.10.0
libtpu: 0.0.40
codegen_flags: <defaults>
</compile_context>

<pallas_src>
import jax
import jax.numpy as jnp
from jax.experimental import pallas as pl
from jax.experimental.pallas import tpu as pltpu

HIDDEN = 128
MAX_BATCH_TILE = 4096  # big tiles amortize the ~0.35us/step pipeline overhead


def _round_up(n, m):
    return (n + m - 1) // m * m


# ---------------------------------------------------------------------------
# Kernels
# ---------------------------------------------------------------------------
def _miafc_kernel_reduce(x_ref, w3_ref, b3_ref, w4_ref, b4_ref, o_ref):
    """D_out == 1: fc3 on the MXU (bf16 in, f32 acc); fc4 as VPU mul + XLU lane reduce."""
    x = x_ref[...].astype(jnp.bfloat16)                                  # cast in-kernel
    h = jnp.dot(x, w3_ref[...], preferred_element_type=jnp.float32)      # (TB, 128) f32
    h = jnp.maximum(h + b3_ref[...], 0.0)
    y = jnp.sum(h * w4_ref[...], axis=-1, keepdims=True)                 # (TB, 1)
    o_ref[...] = (y + b4_ref[0, 0]).astype(o_ref.dtype)                  # narrow store


def _miafc_kernel_matmul(x_ref, w3_ref, b3_ref, w4_ref, b4_ref, o_ref):
    """General D_out > 1: fc4 as a bf16 MXU matmul with f32 accumulation."""
    x = x_ref[...].astype(jnp.bfloat16)
    h = jnp.dot(x, w3_ref[...], preferred_element_type=jnp.float32)
    h = jnp.maximum(h + b3_ref[...], 0.0)
    y = jnp.dot(h.astype(jnp.bfloat16), w4_ref[...],
                preferred_element_type=jnp.float32)
    o_ref[...] = (y + b4_ref[...]).astype(o_ref.dtype)


# ---------------------------------------------------------------------------
# Params
# ---------------------------------------------------------------------------
def init_params(key, input_dim=10, hidden_dim=HIDDEN, output_dim=1):
    """nn.Linear-style init: U(-1/sqrt(fan_in), 1/sqrt(fan_in)); weights kept as (in, out)."""
    k1, k2, k3, k4 = jax.random.split(key, 4)
    bound3 = 1.0 / jnp.sqrt(jnp.float32(input_dim))
    bound4 = 1.0 / jnp.sqrt(jnp.float32(hidden_dim))
    w3_t = jax.random.uniform(k1, (input_dim, hidden_dim), jnp.float32, -bound3, bound3)
    b3 = jax.random.uniform(k2, (1, hidden_dim), jnp.float32, -bound3, bound3)
    w4_t = jax.random.uniform(k3, (hidden_dim, output_dim), jnp.float32, -bound4, bound4)
    b4 = jax.random.uniform(k4, (1, output_dim), jnp.float32, -bound4, bound4)
    return w3_t, b3, w4_t, b4


def pack_params(w3_t, b3, w4_t, b4):
    """One-time layout prep (bf16 casts, fc4 reshape). Do NOT redo per call."""
    d_in, hidden = w3_t.shape
    d_out = w4_t.shape[1]
    w3_p = w3_t.astype(jnp.bfloat16)                       # (d_in, 128), contraction K = d_in
    b3_p = b3.reshape(1, hidden).astype(jnp.float32)
    if d_out == 1:
        w4_p = w4_t.reshape(1, hidden).astype(jnp.float32)  # row vector for the lane reduce
        b4_p = b4.reshape(1, 1).astype(jnp.float32)         # scalar -> SMEM
    else:
        w4_p = w4_t.astype(jnp.bfloat16)                    # (128, d_out) bf16 for the MXU
        b4_p = b4.reshape(1, d_out).astype(jnp.float32)
    return dict(w3=w3_p, b3=b3_p, w4=w4_p, b4=b4_p, d_in=d_in, d_out=d_out)


# ---------------------------------------------------------------------------
# Batch tiling
# ---------------------------------------------------------------------------
def _batch_tiling(batch, max_tile):
    """Balanced batch tiles; >= 2 tiles for mid/large batches (v7x megacore)."""
    n_tiles = pl.cdiv(batch, max_tile)
    if n_tiles < 2 and batch >= 512:
        n_tiles = 2                       # let dimension_semantics shard across 2 TCs on v7x
    if n_tiles <= 1:
        return batch, 1                   # single full-extent block (block dim == full dim)
    tb = _round_up(pl.cdiv(batch, n_tiles), 8)
    return tb, pl.cdiv(batch, tb)


# ---------------------------------------------------------------------------
# Forward
# ---------------------------------------------------------------------------
def miafc_forward(x, params, *, max_batch_tile=MAX_BATCH_TILE):
    """x: (B, D_in) float32; params from pack_params(). Returns (B, D_out) float32."""
    B, d_in = x.shape
    assert d_in == params["d_in"]
    hidden = params["w3"].shape[1]
    d_out = params["d_out"]
    use_reduce = (d_out == 1)

    tb, grid = _batch_tiling(B, max_batch_tile)

    kernel = _miafc_kernel_reduce if use_reduce else _miafc_kernel_matmul
    b4_spec = (pl.BlockSpec(memory_space=pltpu.MemorySpace.SMEM) if use_reduce
               else pl.BlockSpec(params["b4"].shape, lambda i: (0, 0)))

    out = pl.pallas_call(
        kernel,
        out_shape=jax.ShapeDtypeStruct((B, d_out), jnp.float32),
        grid=(grid,),
        in_specs=[
            pl.BlockSpec((tb, d_in), lambda i: (i, 0)),           # x: blocked over batch,
            pl.BlockSpec((d_in, hidden), lambda i: (0, 0)),       #    true d_in (no padding)
            pl.BlockSpec((1, hidden), lambda i: (0, 0)),          # b3: VMEM-resident
            pl.BlockSpec(params["w4"].shape, lambda i: (0, 0)),   # W4 row / (128,d_out) matrix
            b4_spec,                                              # b4: SMEM scalar (D_out==1)
        ],
        out_specs=pl.BlockSpec((tb, d_out), lambda i: (i, 0)),    # narrow output block
        compiler_params=pltpu.CompilerParams(
            dimension_semantics=("parallel",),   # batch tiles shard across v7x's 2 TCs
            vmem_limit_bytes=32 * 1024 * 1024),  # footprint is a few MiB even at TB=4096
    )(x, params["w3"], params["b3"], params["w4"], params["b4"])
    return out


# ---------------------------------------------------------------------------
# Reference (pure JAX, same bf16 fc3 inputs / f32 accumulation as the kernel)
# ---------------------------------------------------------------------------
def _reference(x, w3_t, b3, w4_t, b4):
    h = jnp.maximum(
        jnp.dot(x.astype(jnp.bfloat16), w3_t.astype(jnp.bfloat16),
                preferred_element_type=jnp.float32) + b3, 0.0)
    return h @ w4_t + b4


if __name__ == "__main__":
    key = jax.random.PRNGKey(0)
    k_params, k_x1, k_x2 = jax.random.split(key, 3)

    batch, input_dim, output_dim = 8, 10, 1
    w3_t, b3, w4_t, b4 = init_params(k_params, input_dim=input_dim, output_dim=output_dim)
    params = pack_params(w3_t, b3, w4_t, b4)

    # Small primary example.
    x = jax.random.normal(k_x1, (batch, input_dim), jnp.float32)
    out = jax.block_until_ready(miafc_forward(x, params))
    ref = _reference(x, w3_t, b3, w4_t, b4)
    assert out.shape == (batch, output_dim)
    assert jnp.allclose(out, ref, atol=2e-3, rtol=2e-3)

    # Exercise the multi-tile path with a partial trailing batch block.
    x2 = jax.random.normal(k_x2, (600, input_dim), jnp.float32)
    out2 = jax.block_until_ready(miafc_forward(x2, params))
    ref2 = _reference(x2, w3_t, b3, w4_t, b4)
    assert out2.shape == (600, output_dim)
    assert jnp.allclose(out2, ref2, atol=2e-3, rtol=2e-3)

    print("KERNEL_OK")
</pallas_src>

<mosaic_0001>
module attributes {stable_mosaic.version = 11 : i64} {
  func.func @_miafc_kernel_reduce(%arg0: i32, %arg1: memref<8x10xf32, #tpu.memory_space<vmem>>, %arg2: memref<10x128xbf16, #tpu.memory_space<vmem>>, %arg3: memref<1x128xf32, #tpu.memory_space<vmem>>, %arg4: memref<1x128xf32, #tpu.memory_space<vmem>>, %arg5: memref<1x1xf32, #tpu.memory_space<smem>>, %arg6: memref<8x1xf32, #tpu.memory_space<vmem>>) attributes {dimension_semantics = [#tpu.dimension_semantics<parallel>], iteration_bounds = array<i64: 1>, scalar_prefetch = 0 : i64, scratch_operands = 0 : i64, tpu.core_type = #tpu.core_type<tc>, window_params = [{transform_indices = @transform_0, window_bounds = array<i64: 8, 10>}, {pipeline_mode = #tpu.pipeline_mode<synchronous>, transform_indices = @transform_1, window_bounds = array<i64: 10, 128>}, {pipeline_mode = #tpu.pipeline_mode<synchronous>, transform_indices = @transform_2, window_bounds = array<i64: 1, 128>}, {pipeline_mode = #tpu.pipeline_mode<synchronous>, transform_indices = @transform_3, window_bounds = array<i64: 1, 128>}, {transform_indices = @transform_4, window_bounds = array<i64: 1, 1>}, {transform_indices = @transform_5, window_bounds = array<i64: 8, 1>}]} {
    %c0 = arith.constant 0 : index
    %c0_0 = arith.constant 0 : index
    %0 = vector.load %arg1[%c0, %c0_0] : memref<8x10xf32, #tpu.memory_space<vmem>>, vector<8x10xf32>
    %1 = arith.truncf %0 : vector<8x10xf32> to vector<8x10xbf16>
    %c0_1 = arith.constant 0 : index
    %c0_2 = arith.constant 0 : index
    %2 = vector.load %arg2[%c0_1, %c0_2] : memref<10x128xbf16, #tpu.memory_space<vmem>>, vector<10x128xbf16>
    %cst = arith.constant dense<0.000000e+00> : vector<8x128xf32>
    %3 = tpu.matmul %1, %2, %cst {dimension_numbers = #tpu.dot_dimension_numbers<[1], [0], [0], [1], [0, 0, 1, 1], [], []>} : vector<8x10xbf16>, vector<10x128xbf16>, vector<8x128xf32> -> vector<8x128xf32>
    %c0_3 = arith.constant 0 : index
    %c0_4 = arith.constant 0 : index
    %4 = vector.load %arg3[%c0_3, %c0_4] : memref<1x128xf32, #tpu.memory_space<vmem>>, vector<1x128xf32>
    %5 = vector.broadcast %4 : vector<1x128xf32> to vector<8x128xf32>
    %6 = arith.addf %3, %5 : vector<8x128xf32>
    %cst_5 = arith.constant 0.000000e+00 : f32
    %7 = vector.broadcast %cst_5 : f32 to vector<8x128xf32>
    %8 = arith.maximumf %6, %7 : vector<8x128xf32>
    %c0_6 = arith.constant 0 : index
    %c0_7 = arith.constant 0 : index
    %9 = vector.load %arg4[%c0_6, %c0_7] : memref<1x128xf32, #tpu.memory_space<vmem>>, vector<1x128xf32>
    %10 = vector.broadcast %9 : vector<1x128xf32> to vector<8x128xf32>
    %11 = arith.mulf %8, %10 : vector<8x128xf32>
    %cst_8 = arith.constant dense<0.000000e+00> : vector<8xf32>
    %12 = vector.multi_reduction <add>, %11, %cst_8 [1] : vector<8x128xf32> to vector<8xf32>
    %13 = vector.shape_cast %12 : vector<8xf32> to vector<8x1xf32>
    %c0_9 = arith.constant 0 : index
    %c0_10 = arith.constant 0 : index
    %14 = memref.load %arg5[%c0_9, %c0_10] : memref<1x1xf32, #tpu.memory_space<smem>>
    %15 = vector.broadcast %14 : f32 to vector<8x1xf32>
    %16 = arith.addf %13, %15 : vector<8x1xf32>
    %c0_11 = arith.constant 0 : index
    %c0_12 = arith.constant 0 : index
    %17 = vector.load %arg6[%c0_11, %c0_12] : memref<8x1xf32, #tpu.memory_space<vmem>>, vector<8x1xf32>
    tpu.vector_store %arg6[%c0_11, %c0_12], %16 {strides = array<i32>} : memref<8x1xf32, #tpu.memory_space<vmem>>, vector<8x1xf32>,
    return
  }
  func.func @transform_0(%arg0: i32) -> (i32, i32) {
    %c0_i32 = arith.constant 0 : i32
    %c0_i32_0 = arith.constant 0 : i32
    return %arg0, %c0_i32 : i32, i32
  }
  func.func @transform_1(%arg0: i32) -> (i32, i32) {
    %c0_i32 = arith.constant 0 : i32
    %c0_i32_0 = arith.constant 0 : i32
    %c0_i32_1 = arith.constant 0 : i32
    return %c0_i32, %c0_i32_0 : i32, i32
  }
  func.func @transform_2(%arg0: i32) -> (i32, i32) {
    %c0_i32 = arith.constant 0 : i32
    %c0_i32_0 = arith.constant 0 : i32
    %c0_i32_1 = arith.constant 0 : i32
    return %c0_i32, %c0_i32_0 : i32, i32
  }
  func.func @transform_3(%arg0: i32) -> (i32, i32) {
    %c0_i32 = arith.constant 0 : i32
    %c0_i32_0 = arith.constant 0 : i32
    %c0_i32_1 = arith.constant 0 : i32
    return %c0_i32, %c0_i32_0 : i32, i32
  }
  func.func @transform_4(%arg0: i32) -> (i32, i32) {
    %c0_i32 = arith.constant 0 : i32
    %c0_i32_0 = arith.constant 0 : i32
    %c0_i32_1 = arith.constant 0 : i32
    return %c0_i32, %c0_i32_0 : i32, i32
  }
  func.func @transform_5(%arg0: i32) -> (i32, i32) {
    %c0_i32 = arith.constant 0 : i32
    %c0_i32_0 = arith.constant 0 : i32
    return %arg0, %c0_i32 : i32, i32
  }
}

</mosaic_0001>

<llo_original>
// kernel: tpu_custom_call.1
$region0: #{tpu_custom_call.1}
  #allocation0 [shape = 'u32[]', space=smem, size = 0x4, offset = 0x4, fixed_abs, tag = 'smem constant byte address 0x4 - core index']
  #allocation1 [shape = 'u32[144,128]{1,0:T(1,128)}', space=vmem, size = 0x12000, scoped, tag = 'internal scratch']
  #allocation2 [shape = 'f32[1,1]{1,0:T(1,128)S(6)}', space=smem, size = 0x200, scoped, tag = 'scoped memory for tpu_custom_call.1']
  %s0 = inlined_call_operand.hbm [shape: f32[8,10], index: 0, kind: input, shape index: {}]
  %s1 = inlined_call_operand.hbm [shape: bf16[10,128], index: 1, kind: input, shape index: {}]
  %s2 = inlined_call_operand.vmem [shape: f32[1,128], index: 2, kind: input, shape index: {}]
  %s3 = inlined_call_operand.vmem [shape: f32[1,128], index: 3, kind: input, shape index: {}]
  %s4 = inlined_call_operand.<no memory space> [shape: f32[1,1], index: 4, kind: input, shape index: {}]
  %s5 = inlined_call_operand.vmem [shape: f32[8,1], index: 5, kind: output, shape index: {}]
  %s6 = sld [smem:[#allocation0]]
  $region38: #{tpu_custom_call.1} parent=0
    _
  %s8 = ssub.s32 1, %s6
  %s9 = scalar_select 0, %s8, %s6
  %10 = sst [smem:[#allocation2]] %s4
  $region1: #{tpu_custom_call.1} parent=0
    #allocation3 [shape = 'u8[4096]{0}', space=vmem, size = 0x1000, scoped, tag = 'input window, operand 0, single buffered']
    #allocation4 [shape = 's32[1]{0}', space=sflag, size = 0x4, scoped, tag = 'scoped memory for tpu_custom_call.1']
    #allocation5 [shape = 'u8[4096]{0}', space=vmem, size = 0x1000, scoped, tag = 'input window, operand 1, single buffered']
    #allocation6 [shape = 's32[1]{0}', space=sflag, size = 0x4, scoped, tag = 'scoped memory for tpu_custom_call.1']
    %11 = vsyncpa [#allocation4], 0
    %12 = vsyncpa [#allocation6], 0
    // Predicated region
    $region2: #{tpu_custom_call.1} parent=1 // pred_check
      _
    $region3: #{tpu_custom_call.1} parent=1 // pred_check_branch
      %14 = sbr.rel (0) target = $region5
    $region4: #{tpu_custom_call.1} parent=1 // pred_region
      %s16 = ssub.s32 128, 128
      %17 = vsyncadd [#allocation4], %s16
      %s19 = sshll.u32 [#allocation3], 4
      %s20 = int_to_ptr.vmem [resolvable:$true] %s19
      %22 = dma.hbm_to_vmem [thread:$0]  %s0, 128, %s20, [#allocation4]
    $region5: #{tpu_custom_call.1} parent=1 // pred_fallthru
      _
    // Predicated region
    $region6: #{tpu_custom_call.1} parent=1 // pred_check
      _
    $region7: #{tpu_custom_call.1} parent=1 // pred_check_branch
      %24 = sbr.rel (0) target = $region9
    $region8: #{tpu_custom_call.1} parent=1 // pred_region
      %s26 = ssub.s32 128, 128
      %27 = vsyncadd [#allocation6], %s26
      %s28 = sshll.u32 [#allocation5], 4
      %s29 = int_to_ptr.vmem [resolvable:$true] %s28
      %34 = dma.hbm_to_vmem [thread:$0]  %s1, 128, %s29, [#allocation6], 64, 64, 4
    $region9: #{tpu_custom_call.1} parent=1 // pred_fallthru
      _
    // Predicated region
    $region10: #{tpu_custom_call.1} parent=1 // pred_check
      _
    $region11: #{tpu_custom_call.1} parent=1 // pred_check_branch
      %36 = sbr.rel (0) target = $region13
    $region12: #{tpu_custom_call.1} parent=1 // pred_region
      _
    $region13: #{tpu_custom_call.1} parent=1 // pred_fallthru
      _
    // Predicated region
    $region14: #{tpu_custom_call.1} parent=1 // pred_check
      _
    $region15: #{tpu_custom_call.1} parent=1 // pred_check_branch
      %38 = sbr.rel (0) target = $region17
    $region16: #{tpu_custom_call.1} parent=1 // pred_region
      _
    $region17: #{tpu_custom_call.1} parent=1 // pred_fallthru
      _
    // Predicated region
    $region18: #{tpu_custom_call.1} parent=1 // pred_check
      _
    $region19: #{tpu_custom_call.1} parent=1 // pred_check_branch
      %40 = sbr.rel (0) target = $region21
    $region20: #{tpu_custom_call.1} parent=1 // pred_region
      _
    $region21: #{tpu_custom_call.1} parent=1 // pred_fallthru
      _
    // Predicated region
    $region22: #{tpu_custom_call.1} parent=1 // pred_check
      _
    $region23: #{tpu_custom_call.1} parent=1 // pred_check_branch
      %42 = sbr.rel (0) target = $region25
    $region24: #{tpu_custom_call.1} parent=1 // pred_region
      %43 = dma.done [#allocation4], 128
    $region25: #{tpu_custom_call.1} parent=1 // pred_fallthru
      _
    // Predicated region
    $region26: #{tpu_custom_call.1} parent=1 // pred_check
      _
    $region27: #{tpu_custom_call.1} parent=1 // pred_check_branch
      %45 = sbr.rel (0) target = $region29
    $region28: #{tpu_custom_call.1} parent=1 // pred_region
      %46 = dma.done [#allocation6], 128
    $region29: #{tpu_custom_call.1} parent=1 // pred_fallthru
      _
    %v48 = vld [vmem:[#allocation3] sm:$0xff]
    %v49 = vpack.c.bf16 %v48, %v48
    %v50 = vld [vmem:[#allocation5] sm:$0xf]
    %v51 = vld [vmem:[#allocation5 + $0x4] sm:$0x1]
    %v52 = vld [vmem:[%s2] sm:$0x1]
    %v54 = vlaneseq
    %v55 = vshrl.u32 %v54, 7
    %v56 = vsub.s32 0, %v55
    %v57 = vrot.slane %v52, %v56
    %v61 = vunpack.c.l.b16 %v50
    %v62 = vunpack.c.l.b16 %v51
    %v63 = vpack.c.b16 %v62, %v61
    %vm64 = vcmask 80896
    %v66 = vsel %vm64, %v49, 0
    %vm68 = vcmask 1044480
    %v70 = vsel %vm68, %v63, 0
    %72 = vmatprep.subr.bf16.mxu0 0
    %73 = vmatpush1.bf16.msra.mxu0 %v70
    %74 = vmatprep.subr.bf16.mxu0 0
    %75 = vmatpush1.bf16.msra.mxu0 0
    %76 = vmatprep.subr.bf16.mxu0 0
    %77 = vmatpush1.bf16.msra.mxu0 0
    %78 = vmatprep.subr.bf16.mxu0 0
    %79 = vmatpush1.bf16.msra.mxu0 0
    %80 = vmatprep.subr.bf16.mxu0 0
    %81 = vmatpush1.bf16.msra.mxu0 0
    %82 = vmatprep.subr.bf16.mxu0 0
    %83 = vmatpush1.bf16.msra.mxu0 0
    %84 = vmatprep.subr.bf16.mxu0 0
    %85 = vmatpush1.bf16.msra.mxu0 0
    %86 = vmatprep.subr.bf16.mxu0 0
    %87 = vmatpush1.bf16.msra.mxu0 0
    %88 = vmatprep.subr.bf16.mxu0 0
    %89 = vmatpush1.bf16.msra.mxu0 0
    %90 = vmatprep.subr.bf16.mxu0 0
    %91 = vmatpush1.bf16.msra.mxu0 0
    %92 = vmatprep.subr.bf16.mxu0 0
    %93 = vmatpush1.bf16.msra.mxu0 0
    %94 = vmatprep.subr.bf16.mxu0 0
    %95 = vmatpush1.bf16.msra.mxu0 0
    %96 = vmatprep.subr.bf16.mxu0 0
    %97 = vmatpush1.bf16.msra.mxu0 0
    %98 = vmatprep.subr.bf16.mxu0 0
    %99 = vmatpush1.bf16.msra.mxu0 0
    %100 = vmatprep.subr.bf16.mxu0 0
    %101 = vmatpush1.bf16.msra.mxu0 0
    %102 = vmatprep.subr.bf16.mxu0 0
    %103 = vmatpush1.bf16.msra.mxu0 0
    %104 = vmatprep.mubr.bf16.mxu0 0
    %105 = vmatmul.mubr.bf16.gmra.mrb[0].mxu0 %v66
    %v106 = vpop.f32.mrb[0].mxu0
    %v107 = vadd.f32 %v57, %v106
    %v108 = vpop.f32.mrb[0].mxu0
    %v109 = vpop.f32.mrb[0].mxu0
    %v110 = vpop.f32.mrb[0].mxu0
    %111 = vdwg.mxu0
    %v112 = vmax.f32 %v107, 0.0
    %v113 = vld [vmem:[%s3] sm:$0x1]
    %v115 = vlaneseq
    %v116 = vshrl.u32 %v115, 7
    %v117 = vsub.s32 0, %v116
    %v118 = vrot.slane %v113, %v117
    %v120 = vmul.f32 %v112, %v118
    %121 = vadd.xlane.f32.xlu0 %v120
    %v122 = vpop.xlane.xlu0 %121
    %s123 = sld [smem:[#allocation2]]
    %v124 = vstv %s123
    %v125 = vadd.f32 %v122, %v124
    %vm126 = vcmask 7168
    %127 = vst.msk [vmem:[%s5] sm:$0xff] %vm126, %v125
    // Predicated region
    $region30: #{tpu_custom_call.1} parent=1 // pred_check
      _
    $region31: #{tpu_custom_call.1} parent=1 // pred_check_branch
      %129 = sbr.rel (0) target = $region33
    $region32: #{tpu_custom_call.1} parent=1 // pred_region
      _
    $region33: #{tpu_custom_call.1} parent=1 // pred_fallthru
      _
    // Predicated region
    $region34: #{tpu_custom_call.1} parent=1 // pred_check
      _
    $region35: #{tpu_custom_call.1} parent=1 // pred_check_branch
      %131 = sbr.rel (0) target = $region37
    $region36: #{tpu_custom_call.1} parent=1 // pred_region
      _
    $region37: #{tpu_custom_call.1} parent=1 // pred_fallthru
      _
    %132 = vsyncpa [#allocation4], 1
    %133 = vsyncpa [#allocation6], 1

</llo_original>
